<compile_context>
chip_gen: v5e
topology: v5e:2x2
jax: 0.10.0
libtpu: 0.0.40
codegen_flags: <defaults>
</compile_context>

<pallas_src>
import jax
import jax.numpy as jnp
from jax.experimental import pallas as pl
from jax.experimental.pallas import tpu as pltpu


def _feature_generator_kernel(labels_ref, feat_ref, cls_ref,
                              w1_ref, b1_ref, w2_ref, b2_ref,
                              w3_ref, b3_ref, out_ref):
    # labels_ref : (TB, 1)  int32 class ids
    # feat_ref   : (TB, F)  input features
    # cls_ref    : (NC, H)  per-class hidden contribution  (= E @ W1[:, F:].T)
    # w1_ref     : (F,  H)  feature part of Linear1 (transposed)
    # b1_ref     : (1,  H)
    # w2_ref     : (H,  H)  Linear2 with BN1 folded in
    # b2_ref     : (1,  H)
    # w3_ref     : (H,  Fo) Linear3 with BN2 folded in
    # b3_ref     : (1,  Fo)
    # out_ref    : (TB, Fo)
    tb = labels_ref.shape[0]
    nc = cls_ref.shape[0]

    # Embedding lookup as a tiny one-hot matmul (num_classes is small).
    onehot = (labels_ref[...] ==
              jax.lax.broadcasted_iota(jnp.int32, (tb, nc), 1)
              ).astype(jnp.float32)                               # (TB, NC)

    # Linear1 (concat avoided: feature branch + label branch) + bias.
    h = jnp.dot(feat_ref[...], w1_ref[...],
                preferred_element_type=jnp.float32)
    h = h + jnp.dot(onehot, cls_ref[...],
                    preferred_element_type=jnp.float32)
    h = h + b1_ref[...]
    h = jnp.where(h >= 0, h, 0.2 * h)                  # LeakyReLU(0.2)
    # BN1 (eval) folded into w2/b2 in the wrapper.

    h = jnp.dot(h, w2_ref[...],
                preferred_element_type=jnp.float32) + b2_ref[...]
    h = jnp.where(h >= 0, h, 0.2 * h)                  # LeakyReLU(0.2)
    # BN2 (eval) folded into w3/b3 in the wrapper.

    h = jnp.dot(h, w3_ref[...],
                preferred_element_type=jnp.float32) + b3_ref[...]
    out_ref[...] = jnp.tanh(h).astype(out_ref.dtype)


def feature_generator_pallas(features, labels, params, eps=1e-5):
    """features: (B, feature_dim) f32.  labels: (B,) int32.

    params: dict with PyTorch-layout parameters:
      emb : (num_classes, 32)                  nn.Embedding weight
      w1  : (hidden, feature_dim + 32), b1 : (hidden,)
      bn1 : (gamma, beta, running_mean, running_var), each (hidden,)
      w2  : (hidden, hidden),           b2 : (hidden,)
      bn2 : (gamma, beta, running_mean, running_var)
      w3  : (feature_dim, hidden),      b3 : (feature_dim,)
    """
    B, F = features.shape
    H = params['w1'].shape[0]
    NC = params['emb'].shape[0]
    Fo = params['w3'].shape[0]

    f32 = jnp.float32

    # ---- wrapper-side (one-time) parameter folding -------------------------
    w1_t = jnp.transpose(params['w1']).astype(f32)        # (F+32, H)
    w1f = w1_t[:F]                                        # (F, H)
    w1e = w1_t[F:]                                        # (32, H)
    cls_proj = jnp.dot(params['emb'].astype(f32), w1e)    # (NC, H)
    b1 = params['b1'].astype(f32).reshape(1, H)

    def fold_bn_into_next(bn, w_next_t, b_next):
        gamma, beta, mean, var = (p.astype(f32) for p in bn)
        s = gamma / jnp.sqrt(var + eps)
        t = beta - mean * s
        return s[:, None] * w_next_t, (t @ w_next_t + b_next)

    w2_t = jnp.transpose(params['w2']).astype(f32)        # (H, H)
    w2f, b2f = fold_bn_into_next(params['bn1'], w2_t, params['b2'].astype(f32))
    b2f = b2f.reshape(1, H)

    w3_t = jnp.transpose(params['w3']).astype(f32)        # (H, Fo)
    w3f, b3f = fold_bn_into_next(params['bn2'], w3_t, params['b3'].astype(f32))
    b3f = b3f.reshape(1, Fo)

    # ---- batch padding / tiling --------------------------------------------
    TB_MAX = 256
    Bp = pl.cdiv(B, 8) * 8                 # sublane-aligned
    tb = min(Bp, TB_MAX)
    Bp = pl.cdiv(Bp, tb) * tb              # divisible by the batch tile

    feat_p = jnp.pad(features.astype(f32), ((0, Bp - B), (0, 0)))
    labels_p = jnp.pad(labels.astype(jnp.int32), (0, Bp - B)).reshape(Bp, 1)

    grid = (Bp // tb,)

    out = pl.pallas_call(
        _feature_generator_kernel,
        out_shape=jax.ShapeDtypeStruct((Bp, Fo), f32),
        grid=grid,
        in_specs=[
            pl.BlockSpec((tb, 1), lambda i: (i, 0)),       # labels
            pl.BlockSpec((tb, F), lambda i: (i, 0)),       # features
            pl.BlockSpec((NC, H), lambda i: (0, 0)),       # class -> hidden
            pl.BlockSpec((F, H), lambda i: (0, 0)),        # W1 (feature part)
            pl.BlockSpec((1, H), lambda i: (0, 0)),        # b1
            pl.BlockSpec((H, H), lambda i: (0, 0)),        # W2 (BN1 folded)
            pl.BlockSpec((1, H), lambda i: (0, 0)),        # b2
            pl.BlockSpec((H, Fo), lambda i: (0, 0)),       # W3 (BN2 folded)
            pl.BlockSpec((1, Fo), lambda i: (0, 0)),       # b3
        ],
        out_specs=pl.BlockSpec((tb, Fo), lambda i: (i, 0)),
        compiler_params=pltpu.CompilerParams(
            dimension_semantics=("parallel",)),
    )(labels_p, feat_p, cls_proj, w1f, b1, w2f, b2f, w3f, b3f)

    return out[:B]


def feature_generator_reference(features, labels, params, eps=1e-5):
    """Pure-JAX reference (eval-mode BN) for correctness checking."""
    emb = params['emb'][labels]                                   # (B, 32)
    x = jnp.concatenate([features, emb], axis=1)

    def linear(h, w, b):
        return h @ w.T + b

    def bn(h, p):
        gamma, beta, mean, var = p
        return (h - mean) / jnp.sqrt(var + eps) * gamma + beta

    h = linear(x, params['w1'], params['b1'])
    h = jnp.where(h >= 0, h, 0.2 * h)
    h = bn(h, params['bn1'])
    h = linear(h, params['w2'], params['b2'])
    h = jnp.where(h >= 0, h, 0.2 * h)
    h = bn(h, params['bn2'])
    h = linear(h, params['w3'], params['b3'])
    return jnp.tanh(h)


if __name__ == "__main__":
    key = jax.random.PRNGKey(0)
    B, feature_dim, num_classes, hidden_dim = 8, 64, 2, 256
    input_dim = feature_dim + 32

    ks = jax.random.split(key, 18)
    features = jax.random.normal(ks[0], (B, feature_dim), jnp.float32)
    labels = jax.random.randint(ks[1], (B,), 0, num_classes, jnp.int32)

    params = dict(
        emb=jax.random.normal(ks[2], (num_classes, 32), jnp.float32),
        w1=0.1 * jax.random.normal(ks[3], (hidden_dim, input_dim), jnp.float32),
        b1=0.1 * jax.random.normal(ks[4], (hidden_dim,), jnp.float32),
        bn1=(1.0 + 0.1 * jax.random.normal(ks[5], (hidden_dim,), jnp.float32),
             0.1 * jax.random.normal(ks[6], (hidden_dim,), jnp.float32),
             0.1 * jax.random.normal(ks[7], (hidden_dim,), jnp.float32),
             0.5 + jax.nn.softplus(jax.random.normal(ks[8], (hidden_dim,), jnp.float32))),
        w2=0.1 * jax.random.normal(ks[9], (hidden_dim, hidden_dim), jnp.float32),
        b2=0.1 * jax.random.normal(ks[10], (hidden_dim,), jnp.float32),
        bn2=(1.0 + 0.1 * jax.random.normal(ks[11], (hidden_dim,), jnp.float32),
             0.1 * jax.random.normal(ks[12], (hidden_dim,), jnp.float32),
             0.1 * jax.random.normal(ks[13], (hidden_dim,), jnp.float32),
             0.5 + jax.nn.softplus(jax.random.normal(ks[14], (hidden_dim,), jnp.float32))),
        w3=0.1 * jax.random.normal(ks[15], (feature_dim, hidden_dim), jnp.float32),
        b3=0.1 * jax.random.normal(ks[16], (feature_dim,), jnp.float32),
    )

    out = jax.block_until_ready(feature_generator_pallas(features, labels, params))
    ref = jax.block_until_ready(feature_generator_reference(features, labels, params))

    assert out.shape == (B, feature_dim)
    max_err = jnp.max(jnp.abs(out - ref))
    assert jnp.allclose(out, ref, atol=1e-3, rtol=1e-3), \
        f"max abs err = {max_err}"

    print("KERNEL_OK")
</pallas_src>

<mosaic_0001>
module attributes {stable_mosaic.version = 11 : i64} {
  func.func @_feature_generator_kernel(%arg0: i32, %arg1: memref<8x1xi32, #tpu.memory_space<vmem>>, %arg2: memref<8x64xf32, #tpu.memory_space<vmem>>, %arg3: memref<2x256xf32, #tpu.memory_space<vmem>>, %arg4: memref<64x256xf32, #tpu.memory_space<vmem>>, %arg5: memref<1x256xf32, #tpu.memory_space<vmem>>, %arg6: memref<256x256xf32, #tpu.memory_space<vmem>>, %arg7: memref<1x256xf32, #tpu.memory_space<vmem>>, %arg8: memref<256x64xf32, #tpu.memory_space<vmem>>, %arg9: memref<1x64xf32, #tpu.memory_space<vmem>>, %arg10: memref<8x64xf32, #tpu.memory_space<vmem>>) attributes {dimension_semantics = [#tpu.dimension_semantics<parallel>], iteration_bounds = array<i64: 1>, scalar_prefetch = 0 : i64, scratch_operands = 0 : i64, tpu.core_type = #tpu.core_type<tc>, window_params = [{transform_indices = @transform_0, window_bounds = array<i64: 8, 1>}, {transform_indices = @transform_1, window_bounds = array<i64: 8, 64>}, {pipeline_mode = #tpu.pipeline_mode<synchronous>, transform_indices = @transform_2, window_bounds = array<i64: 2, 256>}, {pipeline_mode = #tpu.pipeline_mode<synchronous>, transform_indices = @transform_3, window_bounds = array<i64: 64, 256>}, {pipeline_mode = #tpu.pipeline_mode<synchronous>, transform_indices = @transform_4, window_bounds = array<i64: 1, 256>}, {pipeline_mode = #tpu.pipeline_mode<synchronous>, transform_indices = @transform_5, window_bounds = array<i64: 256, 256>}, {pipeline_mode = #tpu.pipeline_mode<synchronous>, transform_indices = @transform_6, window_bounds = array<i64: 1, 256>}, {pipeline_mode = #tpu.pipeline_mode<synchronous>, transform_indices = @transform_7, window_bounds = array<i64: 256, 64>}, {pipeline_mode = #tpu.pipeline_mode<synchronous>, transform_indices = @transform_8, window_bounds = array<i64: 1, 64>}, {transform_indices = @transform_9, window_bounds = array<i64: 8, 64>}]} {
    %c0 = arith.constant 0 : index
    %c0_0 = arith.constant 0 : index
    %0 = vector.load %arg1[%c0, %c0_0] : memref<8x1xi32, #tpu.memory_space<vmem>>, vector<8x1xi32>
    %1 = tpu.iota {dimensions = array<i32: 1>} : vector<8x2xi32>
    %2 = vector.broadcast %0 : vector<8x1xi32> to vector<8x2xi32>
    %3 = arith.cmpi eq, %2, %1 : vector<8x2xi32>
    %4 = arith.extui %3 : vector<8x2xi1> to vector<8x2xi32>
    %5 = arith.sitofp %4 : vector<8x2xi32> to vector<8x2xf32>
    %c0_1 = arith.constant 0 : index
    %c0_2 = arith.constant 0 : index
    %6 = vector.load %arg2[%c0_1, %c0_2] : memref<8x64xf32, #tpu.memory_space<vmem>>, vector<8x64xf32>
    %c0_3 = arith.constant 0 : index
    %c0_4 = arith.constant 0 : index
    %7 = vector.load %arg4[%c0_3, %c0_4] : memref<64x256xf32, #tpu.memory_space<vmem>>, vector<64x256xf32>
    %cst = arith.constant dense<0.000000e+00> : vector<8x256xf32>
    %8 = tpu.matmul %6, %7, %cst {dimension_numbers = #tpu.dot_dimension_numbers<[1], [0], [0], [1], [0, 0, 1, 1], [], []>} : vector<8x64xf32>, vector<64x256xf32>, vector<8x256xf32> -> vector<8x256xf32>
    %c0_5 = arith.constant 0 : index
    %c0_6 = arith.constant 0 : index
    %9 = vector.load %arg3[%c0_5, %c0_6] : memref<2x256xf32, #tpu.memory_space<vmem>>, vector<2x256xf32>
    %cst_7 = arith.constant dense<0.000000e+00> : vector<8x256xf32>
    %10 = tpu.matmul %5, %9, %cst_7 {dimension_numbers = #tpu.dot_dimension_numbers<[1], [0], [0], [1], [0, 0, 1, 1], [], []>} : vector<8x2xf32>, vector<2x256xf32>, vector<8x256xf32> -> vector<8x256xf32>
    %11 = arith.addf %8, %10 : vector<8x256xf32>
    %c0_8 = arith.constant 0 : index
    %c0_9 = arith.constant 0 : index
    %12 = vector.load %arg5[%c0_8, %c0_9] : memref<1x256xf32, #tpu.memory_space<vmem>>, vector<1x256xf32>
    %13 = vector.broadcast %12 : vector<1x256xf32> to vector<8x256xf32>
    %14 = arith.addf %11, %13 : vector<8x256xf32>
    %cst_10 = arith.constant 0.000000e+00 : f32
    %15 = vector.broadcast %cst_10 : f32 to vector<8x256xf32>
    %16 = arith.cmpf oge, %14, %15 : vector<8x256xf32>
    %cst_11 = arith.constant 2.000000e-01 : f32
    %17 = vector.broadcast %cst_11 : f32 to vector<8x256xf32>
    %18 = arith.mulf %17, %14 : vector<8x256xf32>
    %19 = arith.select %16, %14, %18 : vector<8x256xi1>, vector<8x256xf32>
    %c0_12 = arith.constant 0 : index
    %c0_13 = arith.constant 0 : index
    %20 = vector.load %arg6[%c0_12, %c0_13] : memref<256x256xf32, #tpu.memory_space<vmem>>, vector<256x256xf32>
    %cst_14 = arith.constant dense<0.000000e+00> : vector<8x256xf32>
    %21 = tpu.matmul %19, %20, %cst_14 {dimension_numbers = #tpu.dot_dimension_numbers<[1], [0], [0], [1], [0, 0, 1, 1], [], []>} : vector<8x256xf32>, vector<256x256xf32>, vector<8x256xf32> -> vector<8x256xf32>
    %c0_15 = arith.constant 0 : index
    %c0_16 = arith.constant 0 : index
    %22 = vector.load %arg7[%c0_15, %c0_16] : memref<1x256xf32, #tpu.memory_space<vmem>>, vector<1x256xf32>
    %23 = vector.broadcast %22 : vector<1x256xf32> to vector<8x256xf32>
    %24 = arith.addf %21, %23 : vector<8x256xf32>
    %cst_17 = arith.constant 0.000000e+00 : f32
    %25 = vector.broadcast %cst_17 : f32 to vector<8x256xf32>
    %26 = arith.cmpf oge, %24, %25 : vector<8x256xf32>
    %cst_18 = arith.constant 2.000000e-01 : f32
    %27 = vector.broadcast %cst_18 : f32 to vector<8x256xf32>
    %28 = arith.mulf %27, %24 : vector<8x256xf32>
    %29 = arith.select %26, %24, %28 : vector<8x256xi1>, vector<8x256xf32>
    %c0_19 = arith.constant 0 : index
    %c0_20 = arith.constant 0 : index
    %30 = vector.load %arg8[%c0_19, %c0_20] : memref<256x64xf32, #tpu.memory_space<vmem>>, vector<256x64xf32>
    %cst_21 = arith.constant dense<0.000000e+00> : vector<8x64xf32>
    %31 = tpu.matmul %29, %30, %cst_21 {dimension_numbers = #tpu.dot_dimension_numbers<[1], [0], [0], [1], [0, 0, 1, 1], [], []>} : vector<8x256xf32>, vector<256x64xf32>, vector<8x64xf32> -> vector<8x64xf32>
    %c0_22 = arith.constant 0 : index
    %c0_23 = arith.constant 0 : index
    %32 = vector.load %arg9[%c0_22, %c0_23] : memref<1x64xf32, #tpu.memory_space<vmem>>, vector<1x64xf32>
    %33 = vector.broadcast %32 : vector<1x64xf32> to vector<8x64xf32>
    %34 = arith.addf %31, %33 : vector<8x64xf32>
    %35 = math.tanh %34 : vector<8x64xf32>
    %c0_24 = arith.constant 0 : index
    %c0_25 = arith.constant 0 : index
    %36 = vector.load %arg10[%c0_24, %c0_25] : memref<8x64xf32, #tpu.memory_space<vmem>>, vector<8x64xf32>
    tpu.vector_store %arg10[%c0_24, %c0_25], %35 {strides = array<i32>} : memref<8x64xf32, #tpu.memory_space<vmem>>, vector<8x64xf32>,
    return
  }
  func.func @transform_0(%arg0: i32) -> (i32, i32) {
    %c0_i32 = arith.constant 0 : i32
    %c0_i32_0 = arith.constant 0 : i32
    return %arg0, %c0_i32 : i32, i32
  }
  func.func @transform_1(%arg0: i32) -> (i32, i32) {
    %c0_i32 = arith.constant 0 : i32
    %c0_i32_0 = arith.constant 0 : i32
    return %arg0, %c0_i32 : i32, i32
  }
  func.func @transform_2(%arg0: i32) -> (i32, i32) {
    %c0_i32 = arith.constant 0 : i32
    %c0_i32_0 = arith.constant 0 : i32
    %c0_i32_1 = arith.constant 0 : i32
    return %c0_i32, %c0_i32_0 : i32, i32
  }
  func.func @transform_3(%arg0: i32) -> (i32, i32) {
    %c0_i32 = arith.constant 0 : i32
    %c0_i32_0 = arith.constant 0 : i32
    %c0_i32_1 = arith.constant 0 : i32
    return %c0_i32, %c0_i32_0 : i32, i32
  }
  func.func @transform_4(%arg0: i32) -> (i32, i32) {
    %c0_i32 = arith.constant 0 : i32
    %c0_i32_0 = arith.constant 0 : i32
    %c0_i32_1 = arith.constant 0 : i32
    return %c0_i32, %c0_i32_0 : i32, i32
  }
  func.func @transform_5(%arg0: i32) -> (i32, i32) {
    %c0_i32 = arith.constant 0 : i32
    %c0_i32_0 = arith.constant 0 : i32
    %c0_i32_1 = arith.constant 0 : i32
    return %c0_i32, %c0_i32_0 : i32, i32
  }
  func.func @transform_6(%arg0: i32) -> (i32, i32) {
    %c0_i32 = arith.constant 0 : i32
    %c0_i32_0 = arith.constant 0 : i32
    %c0_i32_1 = arith.constant 0 : i32
    return %c0_i32, %c0_i32_0 : i32, i32
  }
  func.func @transform_7(%arg0: i32) -> (i32, i32) {
    %c0_i32 = arith.constant 0 : i32
    %c0_i32_0 = arith.constant 0 : i32
    %c0_i32_1 = arith.constant 0 : i32
    return %c0_i32, %c0_i32_0 : i32, i32
  }
  func.func @transform_8(%arg0: i32) -> (i32, i32) {
    %c0_i32 = arith.constant 0 : i32
    %c0_i32_0 = arith.constant 0 : i32
    %c0_i32_1 = arith.constant 0 : i32
    return %c0_i32, %c0_i32_0 : i32, i32
  }
  func.func @transform_9(%arg0: i32) -> (i32, i32) {
    %c0_i32 = arith.constant 0 : i32
    %c0_i32_0 = arith.constant 0 : i32
    return %arg0, %c0_i32 : i32, i32
  }
}

</mosaic_0001>

<llo_original>
// kernel: tpu_custom_call.1
$region0: #{tpu_custom_call.1}
  #allocation0 [shape = 'u32[]', space=smem, size = 0x4, offset = 0x4, fixed_abs, tag = 'smem constant byte address 0x4 - core index']
  #allocation1 [shape = 'u32[72,128]{1,0:T(1,128)}', space=vmem, size = 0x9000, scoped, tag = 'internal scratch']
  %s0 = inlined_call_operand.vmem [shape: s32[8,1], index: 0, kind: input, shape index: {}]
  %s1 = inlined_call_operand.vmem [shape: f32[8,64], index: 1, kind: input, shape index: {}]
  %s2 = inlined_call_operand.vmem [shape: f32[2,256], index: 2, kind: input, shape index: {}]
  %s3 = inlined_call_operand.vmem [shape: f32[64,256], index: 3, kind: input, shape index: {}]
  %s4 = inlined_call_operand.vmem [shape: f32[1,256], index: 4, kind: input, shape index: {}]
  %s5 = inlined_call_operand.hbm [shape: f32[256,256], index: 5, kind: input, shape index: {}]
  %s6 = inlined_call_operand.vmem [shape: f32[1,256], index: 6, kind: input, shape index: {}]
  %s7 = inlined_call_operand.vmem [shape: f32[256,64], index: 7, kind: input, shape index: {}]
  %s8 = inlined_call_operand.vmem [shape: f32[1,64], index: 8, kind: input, shape index: {}]
  %s9 = inlined_call_operand.hbm [shape: f32[8,64], index: 9, kind: output, shape index: {}]
  %s10 = sld [smem:[#allocation0]]
  $region50: #{tpu_custom_call.1} parent=0
    _
  %s12 = ssub.s32 1, %s10
  %s13 = scalar_select 0, %s12, %s10
  $region1: #{tpu_custom_call.1} parent=0
    #allocation2 [shape = 'u8[262144]{0}', space=vmem, size = 0x40000, scoped, tag = 'input window, operand 5, single buffered']
    #allocation3 [shape = 's32[1]{0}', space=sflag, size = 0x4, scoped, tag = 'scoped memory for tpu_custom_call.1']
    #allocation4 [shape = 's32[1]{0}', space=sflag, size = 0x4, scoped, tag = 'scoped memory for tpu_custom_call.1']
    #allocation5 [shape = 'u8[4096]{0}', space=vmem, size = 0x1000, scoped, tag = 'output window, operand 0, single buffered']
    %14 = vsyncpa [#allocation3], 0
    %15 = vsyncpa [#allocation4], 0
    // Predicated region
    $region2: #{tpu_custom_call.1} parent=1 // pred_check
      _
    $region3: #{tpu_custom_call.1} parent=1 // pred_check_branch
      %17 = sbr.rel (0) target = $region5
    $region4: #{tpu_custom_call.1} parent=1 // pred_region
      _
    $region5: #{tpu_custom_call.1} parent=1 // pred_fallthru
      _
    // Predicated region
    $region6: #{tpu_custom_call.1} parent=1 // pred_check
      _
    $region7: #{tpu_custom_call.1} parent=1 // pred_check_branch
      %19 = sbr.rel (0) target = $region9
    $region8: #{tpu_custom_call.1} parent=1 // pred_region
      _
    $region9: #{tpu_custom_call.1} parent=1 // pred_fallthru
      _
    // Predicated region
    $region10: #{tpu_custom_call.1} parent=1 // pred_check
      _
    $region11: #{tpu_custom_call.1} parent=1 // pred_check_branch
      %21 = sbr.rel (0) target = $region13
    $region12: #{tpu_custom_call.1} parent=1 // pred_region
      _
    $region13: #{tpu_custom_call.1} parent=1 // pred_fallthru
      _
    // Predicated region
    $region14: #{tpu_custom_call.1} parent=1 // pred_check
      _
    $region15: #{tpu_custom_call.1} parent=1 // pred_check_branch
      %23 = sbr.rel (0) target = $region17
    $region16: #{tpu_custom_call.1} parent=1 // pred_region
      _
    $region17: #{tpu_custom_call.1} parent=1 // pred_fallthru
      _
    // Predicated region
    $region18: #{tpu_custom_call.1} parent=1 // pred_check
      _
    $region19: #{tpu_custom_call.1} parent=1 // pred_check_branch
      %25 = sbr.rel (0) target = $region21
    $region20: #{tpu_custom_call.1} parent=1 // pred_region
      _
    $region21: #{tpu_custom_call.1} parent=1 // pred_fallthru
      _
    // Predicated region
    $region22: #{tpu_custom_call.1} parent=1 // pred_check
      _
    $region23: #{tpu_custom_call.1} parent=1 // pred_check_branch
      %27 = sbr.rel (0) target = $region25
    $region24: #{tpu_custom_call.1} parent=1 // pred_region
      %29 = vsyncadd [#allocation3], 0
      %s30 = sshll.u32 %s5, 4
      %s31 = int_to_ptr.hbm [resolvable:$true] %s30
      %s32 = sshll.u32 [#allocation2], 4
      %s33 = int_to_ptr.vmem [resolvable:$true] %s32
      %38 = dma.hbm_to_vmem [thread:$0]  %s31, 8192, %s33, [#allocation3], 256, 256, 16
    $region25: #{tpu_custom_call.1} parent=1 // pred_fallthru
      _
    // Predicated region
    $region26: #{tpu_custom_call.1} parent=1 // pred_check
      _
    $region27: #{tpu_custom_call.1} parent=1 // pred_check_branch
      %40 = sbr.rel (0) target = $region29
    $region28: #{tpu_custom_call.1} parent=1 // pred_region
      _
    $region29: #{tpu_custom_call.1} parent=1 // pred_fallthru
      _
    // Predicated region
    $region30: #{tpu_custom_call.1} parent=1 // pred_check
      _
    $region31: #{tpu_custom_call.1} parent=1 // pred_check_branch
      %42 = sbr.rel (0) target = $region33
    $region32: #{tpu_custom_call.1} parent=1 // pred_region
      _
    $region33: #{tpu_custom_call.1} parent=1 // pred_fallthru
      _
    // Predicated region
    $region34: #{tpu_custom_call.1} parent=1 // pred_check
      _
    $region35: #{tpu_custom_call.1} parent=1 // pred_check_branch
      %44 = sbr.rel (0) target = $region37
    $region36: #{tpu_custom_call.1} parent=1 // pred_region
      _
    $region37: #{tpu_custom_call.1} parent=1 // pred_fallthru
      _
    // Predicated region
    $region38: #{tpu_custom_call.1} parent=1 // pred_check
      _
    $region39: #{tpu_custom_call.1} parent=1 // pred_check_branch
      %46 = sbr.rel (0) target = $region41
    $region40: #{tpu_custom_call.1} parent=1 // pred_region
      %48 = dma.done [#allocation3], 8192
    $region41: #{tpu_custom_call.1} parent=1 // pred_fallthru
      _
    %v49 = vld [vmem:[%s0] sm:$0xff]
    %v50 = vlaneseq
    %v51 = vand.u32 %v50, 127
    %52 = vset.pattern.permute.xlu0 0
    %53 = vperm.xlu0 %52, %v49
    %v54 = vpop.permute.xlu0 %53
    %vm55 = vcmp.eq.s32.totalorder %v54, %v51
    %v56 = vsel %vm55, 1, 0
    %v57 = vcvt.s32.f32 %v56
    %v58 = vld [vmem:[%s1] sm:$0xff]
    %v59 = vld [vmem:[%s3] sm:$0xff]
    %v60 = vld [vmem:[%s3 + $0x8] sm:$0xff]
    %v61 = vld [vmem:[%s3 + $0x10] sm:$0xff]
    %v62 = vld [vmem:[%s3 + $0x18] sm:$0xff]
    %v63 = vld [vmem:[%s3 + $0x20] sm:$0xff]
    %v64 = vld [vmem:[%s3 + $0x28] sm:$0xff]
    %v65 = vld [vmem:[%s3 + $0x30] sm:$0xff]
    %v66 = vld [vmem:[%s3 + $0x38] sm:$0xff]
    %v67 = vld [vmem:[%s3 + $0x40] sm:$0xff]
    %v68 = vld [vmem:[%s3 + $0x48] sm:$0xff]
    %v69 = vld [vmem:[%s3 + $0x50] sm:$0xff]
    %v70 = vld [vmem:[%s3 + $0x58] sm:$0xff]
    %v71 = vld [vmem:[%s3 + $0x60] sm:$0xff]
    %v72 = vld [vmem:[%s3 + $0x68] sm:$0xff]
    %v73 = vld [vmem:[%s3 + $0x70] sm:$0xff]
    %v74 = vld [vmem:[%s3 + $0x78] sm:$0xff]
    %v75 = vld [vmem:[%s2] sm:$0xf]
    %77 = vst [vmem:[#allocation1] ss:$4 sm:$0xff] %v75
    %v78 = vld.sshfl [vmem:[#allocation1] sm:$0xff pattern:$0x73625140]
    %v79 = vld.sshfl [vmem:[#allocation1 + $0x8] sm:$0xff pattern:$0x73625140]
    %vm80 = vcmask 15360
    %v82 = vsel %vm80, %v57, 0
    %vm84 = vcmask 1041408
    %v85 = vsel %vm84, %v78, 0
    %v87 = vsel %vm84, %v79, 0
    %89 = vmatpush.msra.mxu0 0.0
    %90 = vmatpush.msra.mxu0 0.0
    %91 = vmatpush.msra.mxu0 0.0
    %92 = vmatpush.msra.mxu0 0.0
    %93 = vmatpush.msra.mxu0 0.0
    %94 = vmatpush.msra.mxu0 0.0
    %95 = vmatpush.msra.mxu0 0.0
    %96 = vmatpush.msra.mxu0 0.0
    %97 = vmatpush.msra.mxu0 0.0
    %98 = vmatpush.msra.mxu0 0.0
    %99 = vmatpush.msra.mxu0 0.0
    %100 = vmatpush.msra.mxu0 0.0
    %101 = vmatpush.msra.mxu0 0.0
    %102 = vmatpush.msra.mxu0 0.0
    %103 = vmatpush.msra.mxu0 0.0
    %104 = vmatpush.msra.mxu0 %v85
    %105 = vmatmul.f32.gmra.mxu0 %v82
    %v106 = vpop.f32.mrf.mxu0
    %v107 = vadd.f32 0.0, %v106
    %108 = vdwg.mxu0
    %109 = vmatpush.msra.mxu0 0.0
    %110 = vmatpush.msra.mxu0 0.0
    %111 = vmatpush.msra.mxu0 0.0
    %112 = vmatpush.msra.mxu0 0.0
    %113 = vmatpush.msra.mxu0 0.0
    %114 = vmatpush.msra.mxu0 0.0
    %115 = vmatpush.msra.mxu0 0.0
    %116 = vmatpush.msra.mxu0 0.0
    %117 = vmatpush.msra.mxu0 0.0
    %118 = vmatpush.msra.mxu0 0.0
    %119 = vmatpush.msra.mxu0 0.0
    %120 = vmatpush.msra.mxu0 0.0
    %121 = vmatpush.msra.mxu0 0.0
    %122 = vmatpush.msra.mxu0 0.0
    %123 = vmatpush.msra.mxu0 0.0
    %124 = vmatpush.msra.mxu0 %v87
    %125 = vmatmul.f32.gmra.mxu0 %v82
    %v126 = vpop.f32.mrf.mxu0
    %v127 = vadd.f32 0.0, %v126
    %128 = vdwg.mxu0
    %vm129 = vcmask 523264
    %v131 = vsel %vm129, %v58, 0
    %133 = vmatpush.msra.mxu0 0.0
    %134 = vmatpush.msra.mxu0 0.0
    %135 = vmatpush.msra.mxu0 0.0
    %136 = vmatpush.msra.mxu0 0.0
    %137 = vmatpush.msra.mxu0 0.0
    %138 = vmatpush.msra.mxu0 0.0
    %139 = vmatpush.msra.mxu0 0.0
    %140 = vmatpush.msra.mxu0 0.0
    %141 = vmatpush.msra.mxu0 %v73
    %142 = vmatpush.msra.mxu0 %v71
    %143 = vmatpush.msra.mxu0 %v69
    %144 = vmatpush.msra.mxu0 %v67
    %145 = vmatpush.msra.mxu0 %v65
    %146 = vmatpush.msra.mxu0 %v63
    %147 = vmatpush.msra.mxu0 %v61
    %148 = vmatpush.msra.mxu0 %v59
    %149 = vmatmul.f32.gmra.mxu0 %v131
    %v150 = vpop.f32.mrf.mxu0
    %v151 = vadd.f32 %v107, %v150
    %152 = vdwg.mxu0
    %153 = vmatpush.msra.mxu0 0.0
    %154 = vmatpush.msra.mxu0 0.0
    %155 = vmatpush.msra.mxu0 0.0
    %156 = vmatpush.msra.mxu0 0.0
    %157 = vmatpush.msra.mxu0 0.0
    %158 = vmatpush.msra.mxu0 0.0
    %159 = vmatpush.msra.mxu0 0.0
    %160 = vmatpush.msra.mxu0 0.0
    %161 = vmatpush.msra.mxu0 %v74
    %162 = vmatpush.msra.mxu0 %v72
    %163 = vmatpush.msra.mxu0 %v70
    %164 = vmatpush.msra.mxu0 %v68
    %165 = vmatpush.msra.mxu0 %v66
    %166 = vmatpush.msra.mxu0 %v64
    %167 = vmatpush.msra.mxu0 %v62
    %168 = vmatpush.msra.mxu0 %v60
    %169 = vmatmul.f32.gmra.mxu0 %v131
    %v170 = vpop.f32.mrf.mxu0
    %v171 = vadd.f32 %v127, %v170
    %172 = vdwg.mxu0
    %v173 = vld [vmem:[%s4] sm:$0x3]
    %v175 = vperm.slane %v173, 0
    %v176 = vperm.slane %v173, 1
    %v179 = vadd.f32 %v151, %v175
    %v180 = vadd.f32 %v171, %v176
    %vm181 = vcmp.ge.f32.partialorder %v179, 0.0
    %vm182 = vcmp.ge.f32.partialorder %v180, 0.0
    %v183 = vmul.f32 %v179, 0.2
    %v184 = vmul.f32 %v180, 0.2
    %v185 = vsel %vm181, %v179, %v183
    %v186 = vsel %vm182, %v180, %v184
    %v187 = vld [vmem:[#allocation2] sm:$0xff]
    %v188 = vld [vmem:[#allocation2 + $0x8] sm:$0xff]
    %v189 = vld [vmem:[#allocation2 + $0x10] sm:$0xff]
    %v190 = vld [vmem:[#allocation2 + $0x18] sm:$0xff]
    %v191 = vld [vmem:[#allocation2 + $0x20] sm:$0xff]
    %v192 = vld [vmem:[#allocation2 + $0x28] sm:$0xff]
    %v193 = vld [vmem:[#allocation2 + $0x30] sm:$0xff]
    %v194 = vld [vmem:[#allocation2 + $0x38] sm:$0xff]
    %v195 = vld [vmem:[#allocation2 + $0x40] sm:$0xff]
    %v196 = vld [vmem:[#allocation2 + $0x48] sm:$0xff]
    %v197 = vld [vmem:[#allocation2 + $0x50] sm:$0xff]
    %v198 = vld [vmem:[#allocation2 + $0x58] sm:$0xff]
    %v199 = vld [vmem:[#allocation2 + $0x60] sm:$0xff]
    %v200 = vld [vmem:[#allocation2 + $0x68] sm:$0xff]
    %v201 = vld [vmem:[#allocation2 + $0x70] sm:$0xff]
    %v202 = vld [vmem:[#allocation2 + $0x78] sm:$0xff]
    %v203 = vld [vmem:[#allocation2 + $0x80] sm:$0xff]
    %v204 = vld [vmem:[#allocation2 + $0x88] sm:$0xff]
    %v205 = vld [vmem:[#allocation2 + $0x90] sm:$0xff]
    %v206 = vld [vmem:[#allocation2 + $0x98] sm:$0xff]
    %v207 = vld [vmem:[#allocation2 + $0xa0] sm:$0xff]
    %v208 = vld [vmem:[#allocation2 + $0xa8] sm:$0xff]
    %v209 = vld [vmem:[#allocation2 + $0xb0] sm:$0xff]
    %v210 = vld [vmem:[#allocation2 + $0xb8] sm:$0xff]
    %v211 = vld [vmem:[#allocation2 + $0xc0] sm:$0xff]
    %v212 = vld [vmem:[#allocation2 + $0xc8] sm:$0xff]
    %v213 = vld [vmem:[#allocation2 + $0xd0] sm:$0xff]
    %v214 = vld [vmem:[#allocation2 + $0xd8] sm:$0xff]
    %v215 = vld [vmem:[#allocation2 + $0xe0] sm:$0xff]
    %v216 = vld [vmem:[#allocation2 + $0xe8] sm:$0xff]
    %v217 = vld [vmem:[#allocation2 + $0xf0] sm:$0xff]
    %v218 = vld [vmem:[#allocation2 + $0xf8] sm:$0xff]
    %v219 = vld [vmem:[#allocation2 + $0x100] sm:$0xff]
    %v220 = vld [vmem:[#allocation2 + $0x108] sm:$0xff]
    %v221 = vld [vmem:[#allocation2 + $0x110] sm:$0xff]
    %v222 = vld [vmem:[#allocation2 + $0x118] sm:$0xff]
    %v223 = vld [vmem:[#allocation2 + $0x120] sm:$0xff]
    %v224 = vld [vmem:[#allocation2 + $0x128] sm:$0xff]
    %v225 = vld [vmem:[#allocation2 + $0x130] sm:$0xff]
    %v226 = vld [vmem:[#allocation2 + $0x138] sm:$0xff]
    %v227 = vld [vmem:[#allocation2 + $0x140] sm:$0xff]
    %v228 = vld [vmem:[#allocation2 + $0x148] sm:$0xff]
    %v229 = vld [vmem:[#allocation2 + $0x150] sm:$0xff]
    %v230 = vld [vmem:[#allocation2 + $0x158] sm:$0xff]
    %v231 = vld [vmem:[#allocation2 + $0x160] sm:$0xff]
    %v232 = vld [vmem:[#allocation2 + $0x168] sm:$0xff]
    %v233 = vld [vmem:[#allocation2 + $0x170] sm:$0xff]
    %v234 = vld [vmem:[#allocation2 + $0x178] sm:$0xff]
    %v235 = vld [vmem:[#allocation2 + $0x180] sm:$0xff]
    %v236 = vld [vmem:[#allocation2 + $0x188] sm:$0xff]
    %v237 = vld [vmem:[#allocation2 + $0x190] sm:$0xff]
    %v238 = vld [vmem:[#allocation2 + $0x198] sm:$0xff]
    %v239 = vld [vmem:[#allocation2 + $0x1a0] sm:$0xff]
    %v240 = vld [vmem:[#allocation2 + $0x1a8] sm:$0xff]
    %v241 = vld [vmem:[#allocation2 + $0x1b0] sm:$0xff]
    %v242 = vld [vmem:[#allocation2 + $0x1b8] sm:$0xff]
    %v243 = vld [vmem:[#allocation2 + $0x1c0] sm:$0xff]
    %v244 = vld [vmem:[#allocation2 + $0x1c8] sm:$0xff]
    %v245 = vld [vmem:[#allocation2 + $0x1d0] sm:$0xff]
    %v246 = vld [vmem:[#allocation2 + $0x1d8] sm:$0xff]
    %v247 = vld [vmem:[#allocation2 + $0x1e0] sm:$0xff]
    %v248 = vld [vmem:[#allocation2 + $0x1e8] sm:$0xff]
    %v249 = vld [vmem:[#allocation2 + $0x1f0] sm:$0xff]
    %v250 = vld [vmem:[#allocation2 + $0x1f8] sm:$0xff]
    %v251 = vld [vmem:[%s6] sm:$0x3]
    %v253 = vperm.slane %v251, 0
    %v254 = vperm.slane %v251, 1
    %257 = vmatpush.msra.mxu0 %v217
    %258 = vmatpush.msra.mxu0 %v215
    %259 = vmatpush.msra.mxu0 %v213
    %260 = vmatpush.msra.mxu0 %v211
    %261 = vmatpush.msra.mxu0 %v209
    %262 = vmatpush.msra.mxu0 %v207
    %263 = vmatpush.msra.mxu0 %v205
    %264 = vmatpush.msra.mxu0 %v203
    %265 = vmatpush.msra.mxu0 %v201
    %266 = vmatpush.msra.mxu0 %v199
    %267 = vmatpush.msra.mxu0 %v197
    %268 = vmatpush.msra.mxu0 %v195
    %269 = vmatpush.msra.mxu0 %v193
    %270 = vmatpush.msra.mxu0 %v191
    %271 = vmatpush.msra.mxu0 %v189
    %272 = vmatpush.msra.mxu0 %v187
    %273 = vmatmul.f32.gmra.mxu0 %v185
    %v274 = vpop.f32.mrf.mxu0
    %v275 = vadd.f32 %v253, %v274
    %276 = vdwg.mxu0
    %277 = vmatpush.msra.mxu0 %v249
    %278 = vmatpush.msra.mxu0 %v247
    %279 = vmatpush.msra.mxu0 %v245
    %280 = vmatpush.msra.mxu0 %v243
    %281 = vmatpush.msra.mxu0 %v241
    %282 = vmatpush.msra.mxu0 %v239
    %283 = vmatpush.msra.mxu0 %v237
    %284 = vmatpush.msra.mxu0 %v235
    %285 = vmatpush.msra.mxu0 %v233
    %286 = vmatpush.msra.mxu0 %v231
    %287 = vmatpush.msra.mxu0 %v229
    %288 = vmatpush.msra.mxu0 %v227
    %289 = vmatpush.msra.mxu0 %v225
    %290 = vmatpush.msra.mxu0 %v223
    %291 = vmatpush.msra.mxu0 %v221
    %292 = vmatpush.msra.mxu0 %v219
    %293 = vmatmul.f32.gmra.mxu0 %v186
    %v294 = vpop.f32.mrf.mxu0
    %v295 = vadd.f32 %v275, %v294
    %296 = vdwg.mxu0
    %297 = vmatpush.msra.mxu0 %v218
    %298 = vmatpush.msra.mxu0 %v216
    %299 = vmatpush.msra.mxu0 %v214
    %300 = vmatpush.msra.mxu0 %v212
    %301 = vmatpush.msra.mxu0 %v210
    %302 = vmatpush.msra.mxu0 %v208
    %303 = vmatpush.msra.mxu0 %v206
    %304 = vmatpush.msra.mxu0 %v204
    %305 = vmatpush.msra.mxu0 %v202
    %306 = vmatpush.msra.mxu0 %v200
    %307 = vmatpush.msra.mxu0 %v198
    %308 = vmatpush.msra.mxu0 %v196
    %309 = vmatpush.msra.mxu0 %v194
    %310 = vmatpush.msra.mxu0 %v192
    %311 = vmatpush.msra.mxu0 %v190
    %312 = vmatpush.msra.mxu0 %v188
    %313 = vmatmul.f32.gmra.mxu0 %v185
    %v314 = vpop.f32.mrf.mxu0
    %v315 = vadd.f32 %v254, %v314
    %316 = vdwg.mxu0
    %317 = vmatpush.msra.mxu0 %v250
    %318 = vmatpush.msra.mxu0 %v248
    %319 = vmatpush.msra.mxu0 %v246
    %320 = vmatpush.msra.mxu0 %v244
    %321 = vmatpush.msra.mxu0 %v242
    %322 = vmatpush.msra.mxu0 %v240
    %323 = vmatpush.msra.mxu0 %v238
    %324 = vmatpush.msra.mxu0 %v236
    %325 = vmatpush.msra.mxu0 %v234
    %326 = vmatpush.msra.mxu0 %v232
    %327 = vmatpush.msra.mxu0 %v230
    %328 = vmatpush.msra.mxu0 %v228
    %329 = vmatpush.msra.mxu0 %v226
    %330 = vmatpush.msra.mxu0 %v224
    %331 = vmatpush.msra.mxu0 %v222
    %332 = vmatpush.msra.mxu0 %v220
    %333 = vmatmul.f32.gmra.mxu0 %v186
    %v334 = vpop.f32.mrf.mxu0
    %v335 = vadd.f32 %v315, %v334
    %336 = vdwg.mxu0
    %vm337 = vcmp.ge.f32.partialorder %v295, 0.0
    %vm338 = vcmp.ge.f32.partialorder %v335, 0.0
    %v339 = vmul.f32 %v295, 0.2
    %v340 = vmul.f32 %v335, 0.2
    %v341 = vsel %vm337, %v295, %v339
    %v342 = vsel %vm338, %v335, %v340
    %v343 = vld [vmem:[%s7] sm:$0xff]
    %v344 = vld [vmem:[%s7 + $0x8] sm:$0xff]
    %v345 = vld [vmem:[%s7 + $0x10] sm:$0xff]
    %v346 = vld [vmem:[%s7 + $0x18] sm:$0xff]
    %v347 = vld [vmem:[%s7 + $0x20] sm:$0xff]
    %v348 = vld [vmem:[%s7 + $0x28] sm:$0xff]
    %v349 = vld [vmem:[%s7 + $0x30] sm:$0xff]
    %v350 = vld [vmem:[%s7 + $0x38] sm:$0xff]
    %v351 = vld [vmem:[%s7 + $0x40] sm:$0xff]
    %v352 = vld [vmem:[%s7 + $0x48] sm:$0xff]
    %v353 = vld [vmem:[%s7 + $0x50] sm:$0xff]
    %v354 = vld [vmem:[%s7 + $0x58] sm:$0xff]
    %v355 = vld [vmem:[%s7 + $0x60] sm:$0xff]
    %v356 = vld [vmem:[%s7 + $0x68] sm:$0xff]
    %v357 = vld [vmem:[%s7 + $0x70] sm:$0xff]
    %v358 = vld [vmem:[%s7 + $0x78] sm:$0xff]
    %v359 = vld [vmem:[%s7 + $0x80] sm:$0xff]
    %v360 = vld [vmem:[%s7 + $0x88] sm:$0xff]
    %v361 = vld [vmem:[%s7 + $0x90] sm:$0xff]
    %v362 = vld [vmem:[%s7 + $0x98] sm:$0xff]
    %v363 = vld [vmem:[%s7 + $0xa0] sm:$0xff]
    %v364 = vld [vmem:[%s7 + $0xa8] sm:$0xff]
    %v365 = vld [vmem:[%s7 + $0xb0] sm:$0xff]
    %v366 = vld [vmem:[%s7 + $0xb8] sm:$0xff]
    %v367 = vld [vmem:[%s7 + $0xc0] sm:$0xff]
    %v368 = vld [vmem:[%s7 + $0xc8] sm:$0xff]
    %v369 = vld [vmem:[%s7 + $0xd0] sm:$0xff]
    %v370 = vld [vmem:[%s7 + $0xd8] sm:$0xff]
    %v371 = vld [vmem:[%s7 + $0xe0] sm:$0xff]
    %v372 = vld [vmem:[%s7 + $0xe8] sm:$0xff]
    %v373 = vld [vmem:[%s7 + $0xf0] sm:$0xff]
    %v374 = vld [vmem:[%s7 + $0xf8] sm:$0xff]
    %v375 = vld [vmem:[%s8] sm:$0x1]
    %v377 = vperm.slane %v375, 0
    %379 = vmatpush.msra.mxu0 %v358
    %380 = vmatpush.msra.mxu0 %v357
    %381 = vmatpush.msra.mxu0 %v356
    %382 = vmatpush.msra.mxu0 %v355
    %383 = vmatpush.msra.mxu0 %v354
    %384 = vmatpush.msra.mxu0 %v353
    %385 = vmatpush.msra.mxu0 %v352
    %386 = vmatpush.msra.mxu0 %v351
    %387 = vmatpush.msra.mxu0 %v350
    %388 = vmatpush.msra.mxu0 %v349
    %389 = vmatpush.msra.mxu0 %v348
    %390 = vmatpush.msra.mxu0 %v347
    %391 = vmatpush.msra.mxu0 %v346
    %392 = vmatpush.msra.mxu0 %v345
    %393 = vmatpush.msra.mxu0 %v344
    %394 = vmatpush.msra.mxu0 %v343
    %395 = vmatmul.f32.gmra.mxu0 %v341
    %v396 = vpop.f32.mrf.mxu0
    %v397 = vadd.f32 %v377, %v396
    %398 = vdwg.mxu0
    %399 = vmatpush.msra.mxu0 %v374
    %400 = vmatpush.msra.mxu0 %v373
    %401 = vmatpush.msra.mxu0 %v372
    %402 = vmatpush.msra.mxu0 %v371
    %403 = vmatpush.msra.mxu0 %v370
    %404 = vmatpush.msra.mxu0 %v369
    %405 = vmatpush.msra.mxu0 %v368
    %406 = vmatpush.msra.mxu0 %v367
    %407 = vmatpush.msra.mxu0 %v366
    %408 = vmatpush.msra.mxu0 %v365
    %409 = vmatpush.msra.mxu0 %v364
    %410 = vmatpush.msra.mxu0 %v363
    %411 = vmatpush.msra.mxu0 %v362
    %412 = vmatpush.msra.mxu0 %v361
    %413 = vmatpush.msra.mxu0 %v360
    %414 = vmatpush.msra.mxu0 %v359
    %415 = vmatmul.f32.gmra.mxu0 %v342
    %v416 = vpop.f32.mrf.mxu0
    %v417 = vadd.f32 %v397, %v416
    %418 = vdwg.mxu0
    %v419 = vtanh.pop %v417
    %420 = vst.msk [vmem:[#allocation5] sm:$0xff] %vm129, %v419
    // Predicated region
    $region42: #{tpu_custom_call.1} parent=1 // pred_check
      _
    $region43: #{tpu_custom_call.1} parent=1 // pred_check_branch
      %422 = sbr.rel (0) target = $region45
    $region44: #{tpu_custom_call.1} parent=1 // pred_region
      %424 = vsyncadd [#allocation4], 0
      %s426 = sshll.u32 [#allocation5], 4
      %s427 = int_to_ptr.vmem [resolvable:$true] %s426
      %s428 = sshll.u32 %s9, 4
      %s429 = int_to_ptr.hbm [resolvable:$true] %s428
      %431 = dma.vmem_to_hbm [thread:$0]  %s427, 128, %s429, [#allocation4]
    $region45: #{tpu_custom_call.1} parent=1 // pred_fallthru
      _
    // Predicated region
    $region46: #{tpu_custom_call.1} parent=1 // pred_check
      _
    $region47: #{tpu_custom_call.1} parent=1 // pred_check_branch
      %433 = sbr.rel (0) target = $region49
    $region48: #{tpu_custom_call.1} parent=1 // pred_region
      %435 = dma.done [#allocation4], 128
    $region49: #{tpu_custom_call.1} parent=1 // pred_fallthru
      _
    %436 = vsyncpa [#allocation3], 1
    %437 = vsyncpa [#allocation4], 1

</llo_original>
